<compile_context>
chip_gen: v7x
topology: tpu7x:2x2x1
jax: 0.10.0
libtpu: 0.0.40
codegen_flags: <defaults>
</compile_context>

<pallas_src>
import functools

import jax
import jax.numpy as jnp
from jax import lax
from jax.experimental import pallas as pl
from jax.experimental.pallas import tpu as pltpu

_BN_EPS = 1e-5      # nn.BatchNorm2d default eps
_L2_EPS = 1e-12     # functional.normalize default eps


def _round_up(x, m):
    return (x + m - 1) // m * m


def _cdiv(a, b):
    return (a + b - 1) // b


def _pad2(a, rows, cols):
    return jnp.pad(a, ((0, rows - a.shape[0]), (0, cols - a.shape[1])))


def _srl(x, n):
    # logical right shift on int32 (lax binary ops want matching shapes)
    return lax.shift_right_logical(x, jnp.full(x.shape, n, dtype=jnp.int32))


def _dropout_scale(shape, row0, seed, keep_prob):
    """Counter-based dropout scale in {0, 1/keep_prob}.

    Pure function of (global row, col, seed): bit-identical between pass 1 and
    pass 2, independent of core assignment / vector layout, and lowers on both
    Mosaic and the CPU interpreter (no stateful TPU PRNG).
    """
    r = row0 + lax.broadcasted_iota(jnp.int32, shape, 0)
    c = lax.broadcasted_iota(jnp.int32, shape, 1)
    x = r * jnp.int32(-1640531527) + c * jnp.int32(16777619) + seed
    # murmur3 fmix32 finalizer (int32 arithmetic wraps)
    x = x ^ _srl(x, 16)
    x = x * jnp.int32(-2048144789)      # 0x85ebca6b
    x = x ^ _srl(x, 13)
    x = x * jnp.int32(-1028477387)      # 0xc2b2ae35
    x = x ^ _srl(x, 16)
    u31 = x & jnp.int32(0x7FFFFFFF)
    thresh = min(int(keep_prob * (1 << 31)), (1 << 31) - 1)
    keep = u31 < jnp.int32(thresh)
    return jnp.where(keep, jnp.float32(1.0 / keep_prob), jnp.float32(0.0))


def _apply_dropout(f_bf, row0, seed, keep_prob):
    if keep_prob >= 1.0:                 # dropout_p == 0 -> identity
        return f_bf
    if keep_prob <= 0.0:                 # dropout_p == 1 -> all zeros
        return jnp.zeros_like(f_bf)
    scale = _dropout_scale(f_bf.shape, row0, seed, keep_prob)
    return f_bf * scale.astype(f_bf.dtype)   # 1/keep_prob folded into the mask


# ----------------------------------------------------------------------------
# Pass 1: stand-in backbone + BatchNorm batch statistics for BOTH branches.
# grid = (num_cores [parallel], tiles_per_core [arbitrary])
# ----------------------------------------------------------------------------
def _backbone_stats_kernel(seed_ref, p_ref, bbw_ref, bbb_ref, w1_ref, b1_ref,
                           f_ref, s1c_ref, s2c_ref, s1d_ref, s2d_ref,
                           *, rows_total, keep_prob):
    c = pl.program_id(0)
    i = pl.program_id(1)
    tr = f_ref.shape[0]
    row0 = (c * pl.num_programs(1) + i) * tr          # global start row

    # --- stand-in Deeplabv3plus: patch-embed matmul + ReLU (bf16 MXU, f32 acc)
    f = jnp.dot(p_ref[...], bbw_ref[...], preferred_element_type=jnp.float32)
    f = jnp.maximum(f + bbb_ref[...], 0.0)
    f_bf = f.astype(jnp.bfloat16)
    f_ref[...] = f_bf                                  # f hits HBM exactly once

    # --- dropout branch input (mask regenerated bit-identically in pass 2)
    f_d = _apply_dropout(f_bf, row0, seed_ref[0], keep_prob)

    # --- single weight-stationary MXU pass over W1 for both branches
    lhs = jnp.concatenate([f_bf, f_d], axis=0)          # (2*tr, D)
    h = jnp.dot(lhs, w1_ref[...], preferred_element_type=jnp.float32)
    h = jnp.maximum(h + b1_ref[...], 0.0)

    # --- mask padded tail rows so BN stats cover exactly rows_total rows
    row = row0 + lax.broadcasted_iota(jnp.int32, (tr, 1), 0)
    valid = (row < rows_total).astype(jnp.float32)
    h_c = h[:tr] * valid
    h_d = h[tr:] * valid

    @pl.when(i == 0)
    def _init():
        s1c_ref[...] = jnp.zeros_like(s1c_ref)
        s2c_ref[...] = jnp.zeros_like(s2c_ref)
        s1d_ref[...] = jnp.zeros_like(s1d_ref)
        s2d_ref[...] = jnp.zeros_like(s2d_ref)

    s1c_ref[...] += jnp.sum(h_c, axis=0, keepdims=True)[None]
    s2c_ref[...] += jnp.sum(h_c * h_c, axis=0, keepdims=True)[None]
    s1d_ref[...] += jnp.sum(h_d, axis=0, keepdims=True)[None]
    s2d_ref[...] += jnp.sum(h_d * h_d, axis=0, keepdims=True)[None]


# ----------------------------------------------------------------------------
# Pass 2: BN apply (pre-folded scale/shift) + output 1x1 conv + L2 normalize.
# grid = (n_tiles [parallel],)
# ----------------------------------------------------------------------------
def _bn_project_norm_kernel(seed_ref, f_ref, scc_ref, shc_ref, scd_ref,
                            shd_ref, w1_ref, b1_ref, w2_ref, b2_ref,
                            oc_ref, od_ref, *, keep_prob):
    i = pl.program_id(0)
    tr = f_ref.shape[0]
    row0 = i * tr

    f_bf = f_ref[...]
    f_d = _apply_dropout(f_bf, row0, seed_ref[0], keep_prob)

    # one weight-stationary MXU pass over W1 for both branches
    lhs = jnp.concatenate([f_bf, f_d], axis=0)
    h = jnp.dot(lhs, w1_ref[...], preferred_element_type=jnp.float32)
    h = jnp.maximum(h + b1_ref[...], 0.0)

    # BatchNorm folded to one (1,D) scale/shift per branch (precomputed in JAX)
    h_c = h[:tr] * scc_ref[...] + shc_ref[...]
    h_d = h[tr:] * scd_ref[...] + shd_ref[...]

    # one weight-stationary MXU pass over W2 for both branches
    lhs2 = jnp.concatenate([h_c, h_d], axis=0).astype(jnp.bfloat16)
    y = jnp.dot(lhs2, w2_ref[...], preferred_element_type=jnp.float32) + b2_ref[...]
    y_c = y[:tr]
    y_d = y[tr:]

    # functional.normalize(p=2, dim=channel); padded output columns are zero.
    ss_c = jnp.maximum(jnp.sum(y_c * y_c, axis=1, keepdims=True),
                       _L2_EPS * _L2_EPS)
    oc_ref[...] = (y_c * lax.rsqrt(ss_c)).astype(oc_ref.dtype)
    ss_d = jnp.maximum(jnp.sum(y_d * y_d, axis=1, keepdims=True),
                       _L2_EPS * _L2_EPS)
    od_ref[...] = (y_d * lax.rsqrt(ss_d)).astype(od_ref.dtype)


# ----------------------------------------------------------------------------
# VisualNet forward (glue in plain JAX: patch extraction, padding, BN fold).
# ----------------------------------------------------------------------------
def visualnet_forward(img_nchw, params, *, dropout_p, dropout_seed,
                      row_tile=1024, num_cores=2):
    """Returns (common_f, dropout_common_f) as bf16 NHWC (N, H/4, W/4, out_dim)."""
    N, C, H, W = img_nchw.shape
    PS = 4                                  # stand-in backbone stride / patch
    Hp, Wp = H // PS, W // PS
    R = N * Hp * Wp
    P = C * PS * PS
    D = params["bb_w"].shape[1]             # decoder.out_dim (= MLP in_dim)
    O = params["w2"].shape[1]               # common_space_mlp.out_dim

    # Lane-dense padding: channel-like dims to multiples of 128.
    P_pad = _round_up(P, 128)
    D_pad = _round_up(D, 128)
    O_pad = _round_up(O, 128)

    # Row tile: large enough to amortize the ~0.35 us/step pipeline overhead,
    # clamped so row-proportional VMEM stays ~20 MiB (safe under v7x's 64 MiB
    # physical VMEM with weights + double buffering + headroom).
    per_row_bytes = 36 * D_pad + 24 * O_pad + 4 * P_pad
    budget_rows = max(8, ((20 << 20) // per_row_bytes) // 8 * 8)
    row_tile = max(8, min(_round_up(row_tile, 8), budget_rows,
                          _round_up(_cdiv(R, num_cores), 8)))
    tiles_per_core = _cdiv(R, num_cores * row_tile)
    R_pad = num_cores * tiles_per_core * row_tile
    n_tiles = num_cores * tiles_per_core

    # --- glue: bf16 BEFORE the NCHW -> (R, P) transpose, then zero-pad.
    patches = img_nchw.astype(jnp.bfloat16)
    patches = patches.reshape(N, C, Hp, PS, Wp, PS)
    patches = patches.transpose(0, 2, 4, 1, 3, 5).reshape(R, P)
    patches = _pad2(patches, R_pad, P_pad)

    bb_w = _pad2(params["bb_w"], P_pad, D_pad).astype(jnp.bfloat16)
    bb_b = _pad2(params["bb_b"], 1, D_pad).astype(jnp.float32)
    w1 = _pad2(params["w1"], D_pad, D_pad).astype(jnp.bfloat16)
    b1 = _pad2(params["b1"], 1, D_pad).astype(jnp.float32)
    gamma = _pad2(params["gamma"], 1, D_pad).astype(jnp.float32)
    beta = _pad2(params["beta"], 1, D_pad).astype(jnp.float32)
    w2 = _pad2(params["w2"], D_pad, O_pad).astype(jnp.bfloat16)
    b2 = _pad2(params["b2"], 1, O_pad).astype(jnp.float32)

    seed = jnp.asarray([dropout_seed], jnp.int32)
    keep_prob = 1.0 - float(dropout_p)

    smem = pl.BlockSpec(memory_space=pltpu.MemorySpace.SMEM)
    vmem_limit = 64 * 1024 * 1024

    # --- pass 1: backbone + per-core partial BN batch statistics.
    f_pad, s1c, s2c, s1d, s2d = pl.pallas_call(
        functools.partial(_backbone_stats_kernel,
                          rows_total=R, keep_prob=keep_prob),
        out_shape=(
            jax.ShapeDtypeStruct((R_pad, D_pad), jnp.bfloat16),
            jax.ShapeDtypeStruct((num_cores, 1, D_pad), jnp.float32),
            jax.ShapeDtypeStruct((num_cores, 1, D_pad), jnp.float32),
            jax.ShapeDtypeStruct((num_cores, 1, D_pad), jnp.float32),
            jax.ShapeDtypeStruct((num_cores, 1, D_pad), jnp.float32),
        ),
        grid=(num_cores, tiles_per_core),
        in_specs=[
            smem,                                                    # seed
            pl.BlockSpec((row_tile, P_pad),
                         lambda c, i: (c * tiles_per_core + i, 0)),  # patches
            pl.BlockSpec((P_pad, D_pad), lambda c, i: (0, 0)),       # backbone W
            pl.BlockSpec((1, D_pad), lambda c, i: (0, 0)),           # backbone b
            pl.BlockSpec((D_pad, D_pad), lambda c, i: (0, 0)),       # W1
            pl.BlockSpec((1, D_pad), lambda c, i: (0, 0)),           # b1
        ],
        out_specs=(
            pl.BlockSpec((row_tile, D_pad),
                         lambda c, i: (c * tiles_per_core + i, 0)),  # f (bf16)
            pl.BlockSpec((1, 1, D_pad), lambda c, i: (c, 0, 0)),     # s1 clean
            pl.BlockSpec((1, 1, D_pad), lambda c, i: (c, 0, 0)),     # s2 clean
            pl.BlockSpec((1, 1, D_pad), lambda c, i: (c, 0, 0)),     # s1 drop
            pl.BlockSpec((1, 1, D_pad), lambda c, i: (c, 0, 0)),     # s2 drop
        ),
        compiler_params=pltpu.CompilerParams(
            dimension_semantics=("parallel", "arbitrary"),
            vmem_limit_bytes=vmem_limit),
    )(seed, patches, bb_w, bb_b, w1, b1)

    # --- fold BatchNorm (training-mode batch stats) in plain JAX (tiny (1,D)).
    inv_n = jnp.float32(1.0 / R)

    def _fold(s1, s2):
        s1 = jnp.sum(s1, axis=0)                     # combine per-core partials
        s2 = jnp.sum(s2, axis=0)
        mean = s1 * inv_n
        var = jnp.maximum(s2 * inv_n - mean * mean, 0.0)
        scale = gamma * lax.rsqrt(var + _BN_EPS)
        return scale, beta - mean * scale

    scale_c, shift_c = _fold(s1c, s2c)
    scale_d, shift_d = _fold(s1d, s2d)

    # --- pass 2: BN apply + projection + L2 normalize, both branches fused.
    common, dropped = pl.pallas_call(
        functools.partial(_bn_project_norm_kernel, keep_prob=keep_prob),
        out_shape=(
            jax.ShapeDtypeStruct((R_pad, O_pad), jnp.bfloat16),
            jax.ShapeDtypeStruct((R_pad, O_pad), jnp.bfloat16),
        ),
        grid=(n_tiles,),
        in_specs=[
            smem,                                                # seed
            pl.BlockSpec((row_tile, D_pad), lambda i: (i, 0)),   # f
            pl.BlockSpec((1, D_pad), lambda i: (0, 0)),          # scale clean
            pl.BlockSpec((1, D_pad), lambda i: (0, 0)),          # shift clean
            pl.BlockSpec((1, D_pad), lambda i: (0, 0)),          # scale drop
            pl.BlockSpec((1, D_pad), lambda i: (0, 0)),          # shift drop
            pl.BlockSpec((D_pad, D_pad), lambda i: (0, 0)),      # W1
            pl.BlockSpec((1, D_pad), lambda i: (0, 0)),          # b1
            pl.BlockSpec((D_pad, O_pad), lambda i: (0, 0)),      # W2
            pl.BlockSpec((1, O_pad), lambda i: (0, 0)),          # b2
        ],
        out_specs=(
            pl.BlockSpec((row_tile, O_pad), lambda i: (i, 0)),
            pl.BlockSpec((row_tile, O_pad), lambda i: (i, 0)),
        ),
        compiler_params=pltpu.CompilerParams(
            dimension_semantics=("parallel",),
            vmem_limit_bytes=vmem_limit),
    )(seed, f_pad, scale_c, shift_c, scale_d, shift_d, w1, b1, w2, b2)

    common = common[:R, :O].reshape(N, Hp, Wp, O)
    dropped = dropped[:R, :O].reshape(N, Hp, Wp, O)
    return common, dropped


def init_params(key, *, img_c, patch, in_dim, out_dim):
    ks = jax.random.split(key, 5)
    P = img_c * patch * patch
    return {
        # stand-in backbone (patch embedding)
        "bb_w": jax.random.normal(ks[0], (P, in_dim), jnp.float32) * 0.05,
        "bb_b": jnp.zeros((1, in_dim), jnp.float32),
        # common_space_mlp with hidden_layer = 1:
        #   Conv2d(in,in,1) -> ReLU -> BatchNorm2d(in) -> Conv2d(in,out,1)
        "w1": jax.random.normal(ks[1], (in_dim, in_dim), jnp.float32) * 0.05,
        "b1": jax.random.normal(ks[2], (1, in_dim), jnp.float32) * 0.01,
        "gamma": jnp.ones((1, in_dim), jnp.float32),
        "beta": jnp.zeros((1, in_dim), jnp.float32),
        "w2": jax.random.normal(ks[3], (in_dim, out_dim), jnp.float32) * 0.05,
        "b2": jax.random.normal(ks[4], (1, out_dim), jnp.float32) * 0.01,
    }


def _reference_common_f(img_nchw, params):
    """Pure-JAX f32 reference for the clean (non-dropout) branch."""
    N, C, H, W = img_nchw.shape
    PS = 4
    Hp, Wp = H // PS, W // PS
    patches = img_nchw.reshape(N, C, Hp, PS, Wp, PS)
    patches = patches.transpose(0, 2, 4, 1, 3, 5).reshape(N * Hp * Wp,
                                                          C * PS * PS)
    f = jnp.maximum(patches @ params["bb_w"] + params["bb_b"], 0.0)
    h = jnp.maximum(f @ params["w1"] + params["b1"], 0.0)
    mean = jnp.mean(h, axis=0, keepdims=True)
    var = jnp.mean((h - mean) ** 2, axis=0, keepdims=True)
    h = (h - mean) * lax.rsqrt(var + _BN_EPS) * params["gamma"] + params["beta"]
    y = h @ params["w2"] + params["b2"]
    y = y / jnp.maximum(jnp.linalg.norm(y, axis=1, keepdims=True), _L2_EPS)
    return y.reshape(N, Hp, Wp, -1)


if __name__ == "__main__":
    key = jax.random.PRNGKey(0)
    k_img, k_param = jax.random.split(key, 2)

    # small shapes: batch=2, image 3x16x16, decoder.out_dim=32, mlp out_dim=16
    img = jax.random.normal(k_img, (2, 3, 16, 16), jnp.float32)
    params = init_params(k_param, img_c=3, patch=4, in_dim=32, out_dim=16)

    common_f, dropout_common_f = visualnet_forward(
        img, params, dropout_p=0.5, dropout_seed=1234)
    jax.block_until_ready((common_f, dropout_common_f))

    assert common_f.shape == (2, 4, 4, 16)
    assert dropout_common_f.shape == (2, 4, 4, 16)
    cf = common_f.astype(jnp.float32)
    df = dropout_common_f.astype(jnp.float32)
    assert bool(jnp.all(jnp.isfinite(cf)))
    assert bool(jnp.all(jnp.isfinite(df)))
    # unit L2 norm along channels (functional.normalize); bf16 output tolerance
    assert jnp.allclose(jnp.sum(cf * cf, axis=-1), 1.0, atol=3e-2)
    assert jnp.allclose(jnp.sum(df * df, axis=-1), 1.0, atol=3e-2)
    # clean branch tracks the pure-f32 JAX reference (bf16 operand tolerance)
    ref = _reference_common_f(img, params)
    cos = jnp.sum(cf * ref, axis=-1)
    assert float(jnp.min(cos)) > 0.98
    print("KERNEL_OK")
</pallas_src>

<mosaic_0001>
module attributes {stable_mosaic.version = 11 : i64} {
  func.func @_backbone_stats_kernel(%arg0: i32, %arg1: i32, %arg2: memref<1xi32, #tpu.memory_space<smem>>, %arg3: memref<16x128xbf16, #tpu.memory_space<vmem>>, %arg4: memref<128x128xbf16, #tpu.memory_space<vmem>>, %arg5: memref<1x128xf32, #tpu.memory_space<vmem>>, %arg6: memref<128x128xbf16, #tpu.memory_space<vmem>>, %arg7: memref<1x128xf32, #tpu.memory_space<vmem>>, %arg8: memref<16x128xbf16, #tpu.memory_space<vmem>>, %arg9: memref<1x1x128xf32, #tpu.memory_space<vmem>>, %arg10: memref<1x1x128xf32, #tpu.memory_space<vmem>>, %arg11: memref<1x1x128xf32, #tpu.memory_space<vmem>>, %arg12: memref<1x1x128xf32, #tpu.memory_space<vmem>>) attributes {dimension_semantics = [#tpu.dimension_semantics<parallel>, #tpu.dimension_semantics<arbitrary>], iteration_bounds = array<i64: 2, 1>, scalar_prefetch = 0 : i64, scratch_operands = 0 : i64, tpu.core_type = #tpu.core_type<tc>, window_params = [{transform_indices = @transform_0, window_bounds = array<i64: 1>}, {transform_indices = @transform_1, window_bounds = array<i64: 16, 128>}, {pipeline_mode = #tpu.pipeline_mode<synchronous>, transform_indices = @transform_2, window_bounds = array<i64: 128, 128>}, {pipeline_mode = #tpu.pipeline_mode<synchronous>, transform_indices = @transform_3, window_bounds = array<i64: 1, 128>}, {pipeline_mode = #tpu.pipeline_mode<synchronous>, transform_indices = @transform_4, window_bounds = array<i64: 128, 128>}, {pipeline_mode = #tpu.pipeline_mode<synchronous>, transform_indices = @transform_5, window_bounds = array<i64: 1, 128>}, {transform_indices = @transform_6, window_bounds = array<i64: 16, 128>}, {transform_indices = @transform_7, window_bounds = array<i64: 1, 1, 128>}, {transform_indices = @transform_8, window_bounds = array<i64: 1, 1, 128>}, {transform_indices = @transform_9, window_bounds = array<i64: 1, 1, 128>}, {transform_indices = @transform_10, window_bounds = array<i64: 1, 1, 128>}]} {
    %c1_i32 = arith.constant 1 : i32
    %0 = arith.muli %arg0, %c1_i32 : i32
    %1 = arith.addi %0, %arg1 : i32
    %c16_i32 = arith.constant 16 : i32
    %2 = arith.muli %1, %c16_i32 : i32
    %c0 = arith.constant 0 : index
    %c0_0 = arith.constant 0 : index
    %3 = vector.load %arg3[%c0, %c0_0] : memref<16x128xbf16, #tpu.memory_space<vmem>>, vector<16x128xbf16>
    %c0_1 = arith.constant 0 : index
    %c0_2 = arith.constant 0 : index
    %4 = vector.load %arg4[%c0_1, %c0_2] : memref<128x128xbf16, #tpu.memory_space<vmem>>, vector<128x128xbf16>
    %cst = arith.constant dense<0.000000e+00> : vector<16x128xf32>
    %5 = tpu.matmul %3, %4, %cst {dimension_numbers = #tpu.dot_dimension_numbers<[1], [0], [0], [1], [0, 0, 1, 1], [], []>} : vector<16x128xbf16>, vector<128x128xbf16>, vector<16x128xf32> -> vector<16x128xf32>
    %c0_3 = arith.constant 0 : index
    %c0_4 = arith.constant 0 : index
    %6 = vector.load %arg5[%c0_3, %c0_4] : memref<1x128xf32, #tpu.memory_space<vmem>>, vector<1x128xf32>
    %7 = vector.broadcast %6 : vector<1x128xf32> to vector<16x128xf32>
    %8 = arith.addf %5, %7 : vector<16x128xf32>
    %cst_5 = arith.constant 0.000000e+00 : f32
    %9 = vector.broadcast %cst_5 : f32 to vector<16x128xf32>
    %10 = arith.maximumf %8, %9 : vector<16x128xf32>
    %11 = arith.truncf %10 : vector<16x128xf32> to vector<16x128xbf16>
    %c0_6 = arith.constant 0 : index
    %c0_7 = arith.constant 0 : index
    %12 = vector.load %arg8[%c0_6, %c0_7] : memref<16x128xbf16, #tpu.memory_space<vmem>>, vector<16x128xbf16>
    tpu.vector_store %arg8[%c0_6, %c0_7], %11 {strides = array<i32>} : memref<16x128xbf16, #tpu.memory_space<vmem>>, vector<16x128xbf16>,
    %c0_8 = arith.constant 0 : index
    %13 = memref.load %arg2[%c0_8] : memref<1xi32, #tpu.memory_space<smem>>
    %14 = tpu.iota {dimensions = array<i32: 0>} : vector<16x128xi32>
    %15 = vector.broadcast %2 : i32 to vector<16x128xi32>
    %16 = arith.addi %15, %14 : vector<16x128xi32>
    %17 = tpu.iota {dimensions = array<i32: 1>} : vector<16x128xi32>
    %c-1640531527_i32 = arith.constant -1640531527 : i32
    %18 = vector.broadcast %c-1640531527_i32 : i32 to vector<16x128xi32>
    %19 = arith.muli %16, %18 : vector<16x128xi32>
    %c16777619_i32 = arith.constant 16777619 : i32
    %20 = vector.broadcast %c16777619_i32 : i32 to vector<16x128xi32>
    %21 = arith.muli %17, %20 : vector<16x128xi32>
    %22 = arith.addi %19, %21 : vector<16x128xi32>
    %23 = vector.broadcast %13 : i32 to vector<16x128xi32>
    %24 = arith.addi %22, %23 : vector<16x128xi32>
    %c16_i32_9 = arith.constant 16 : i32
    %25 = vector.broadcast %c16_i32_9 : i32 to vector<16x128xi32>
    %26 = arith.shrui %24, %25 : vector<16x128xi32>
    %27 = arith.xori %24, %26 : vector<16x128xi32>
    %c-2048144789_i32 = arith.constant -2048144789 : i32
    %28 = vector.broadcast %c-2048144789_i32 : i32 to vector<16x128xi32>
    %29 = arith.muli %27, %28 : vector<16x128xi32>
    %c13_i32 = arith.constant 13 : i32
    %30 = vector.broadcast %c13_i32 : i32 to vector<16x128xi32>
    %31 = arith.shrui %29, %30 : vector<16x128xi32>
    %32 = arith.xori %29, %31 : vector<16x128xi32>
    %c-1028477387_i32 = arith.constant -1028477387 : i32
    %33 = vector.broadcast %c-1028477387_i32 : i32 to vector<16x128xi32>
    %34 = arith.muli %32, %33 : vector<16x128xi32>
    %c16_i32_10 = arith.constant 16 : i32
    %35 = vector.broadcast %c16_i32_10 : i32 to vector<16x128xi32>
    %36 = arith.shrui %34, %35 : vector<16x128xi32>
    %37 = arith.xori %34, %36 : vector<16x128xi32>
    %c2147483647_i32 = arith.constant 2147483647 : i32
    %38 = vector.broadcast %c2147483647_i32 : i32 to vector<16x128xi32>
    %39 = arith.andi %37, %38 : vector<16x128xi32>
    %c1073741824_i32 = arith.constant 1073741824 : i32
    %40 = vector.broadcast %c1073741824_i32 : i32 to vector<16x128xi32>
    %41 = arith.cmpi slt, %39, %40 : vector<16x128xi32>
    %cst_11 = arith.constant 2.000000e+00 : f32
    %cst_12 = arith.constant 0.000000e+00 : f32
    %42 = vector.broadcast %cst_11 : f32 to vector<16x128xf32>
    %43 = vector.broadcast %cst_12 : f32 to vector<16x128xf32>
    %44 = arith.select %41, %42, %43 : vector<16x128xi1>, vector<16x128xf32>
    %45 = arith.truncf %44 : vector<16x128xf32> to vector<16x128xbf16>
    %46 = arith.mulf %11, %45 : vector<16x128xbf16>
    %47 = tpu.concatenate %11, %46 in 0 : vector<16x128xbf16>, vector<16x128xbf16> -> vector<32x128xbf16>
    %c0_13 = arith.constant 0 : index
    %c0_14 = arith.constant 0 : index
    %48 = vector.load %arg6[%c0_13, %c0_14] : memref<128x128xbf16, #tpu.memory_space<vmem>>, vector<128x128xbf16>
    %cst_15 = arith.constant dense<0.000000e+00> : vector<32x128xf32>
    %49 = tpu.matmul %47, %48, %cst_15 {dimension_numbers = #tpu.dot_dimension_numbers<[1], [0], [0], [1], [0, 0, 1, 1], [], []>} : vector<32x128xbf16>, vector<128x128xbf16>, vector<32x128xf32> -> vector<32x128xf32>
    %c0_16 = arith.constant 0 : index
    %c0_17 = arith.constant 0 : index
    %50 = vector.load %arg7[%c0_16, %c0_17] : memref<1x128xf32, #tpu.memory_space<vmem>>, vector<1x128xf32>
    %51 = vector.broadcast %50 : vector<1x128xf32> to vector<32x128xf32>
    %52 = arith.addf %49, %51 : vector<32x128xf32>
    %cst_18 = arith.constant 0.000000e+00 : f32
    %53 = vector.broadcast %cst_18 : f32 to vector<32x128xf32>
    %54 = arith.maximumf %52, %53 : vector<32x128xf32>
    %55 = tpu.iota {dimensions = array<i32: 0>} : vector<16x1xi32>
    %56 = vector.broadcast %2 : i32 to vector<16x1xi32>
    %57 = arith.addi %56, %55 : vector<16x1xi32>
    %c32_i32 = arith.constant 32 : i32
    %58 = vector.broadcast %c32_i32 : i32 to vector<16x1xi32>
    %59 = arith.cmpi slt, %57, %58 : vector<16x1xi32>
    %60 = arith.extui %59 : vector<16x1xi1> to vector<16x1xi32>
    %61 = arith.sitofp %60 : vector<16x1xi32> to vector<16x1xf32>
    %62 = vector.extract_strided_slice %54 {offsets = [0, 0], sizes = [16, 128], strides = [1, 1]} : vector<32x128xf32> to vector<16x128xf32>
    %63 = vector.broadcast %61 : vector<16x1xf32> to vector<16x128xf32>
    %64 = arith.mulf %62, %63 : vector<16x128xf32>
    %65 = vector.extract_strided_slice %54 {offsets = [16, 0], sizes = [16, 128], strides = [1, 1]} : vector<32x128xf32> to vector<16x128xf32>
    %66 = vector.broadcast %61 : vector<16x1xf32> to vector<16x128xf32>
    %67 = arith.mulf %65, %66 : vector<16x128xf32>
    %c0_i32 = arith.constant 0 : i32
    %68 = arith.cmpi eq, %arg1, %c0_i32 : i32
    %69 = arith.extui %68 : i1 to i32
    %c0_i32_19 = arith.constant 0 : i32
    %70 = arith.cmpi ne, %69, %c0_i32_19 : i32
    scf.if %70 {
      %cst_48 = arith.constant 0.000000e+00 : f32
      %97 = vector.broadcast %cst_48 : f32 to vector<1x1x128xf32>
      %c0_49 = arith.constant 0 : index
      %c0_50 = arith.constant 0 : index
      %c0_51 = arith.constant 0 : index
      %98 = vector.load %arg9[%c0_49, %c0_50, %c0_51] : memref<1x1x128xf32, #tpu.memory_space<vmem>>, vector<1x1x128xf32>
      tpu.vector_store %arg9[%c0_49, %c0_50, %c0_51], %97 {strides = array<i32>} : memref<1x1x128xf32, #tpu.memory_space<vmem>>, vector<1x1x128xf32>,
      %cst_52 = arith.constant 0.000000e+00 : f32
      %99 = vector.broadcast %cst_52 : f32 to vector<1x1x128xf32>
      %c0_53 = arith.constant 0 : index
      %c0_54 = arith.constant 0 : index
      %c0_55 = arith.constant 0 : index
      %100 = vector.load %arg10[%c0_53, %c0_54, %c0_55] : memref<1x1x128xf32, #tpu.memory_space<vmem>>, vector<1x1x128xf32>
      tpu.vector_store %arg10[%c0_53, %c0_54, %c0_55], %99 {strides = array<i32>} : memref<1x1x128xf32, #tpu.memory_space<vmem>>, vector<1x1x128xf32>,
      %cst_56 = arith.constant 0.000000e+00 : f32
      %101 = vector.broadcast %cst_56 : f32 to vector<1x1x128xf32>
      %c0_57 = arith.constant 0 : index
      %c0_58 = arith.constant 0 : index
      %c0_59 = arith.constant 0 : index
      %102 = vector.load %arg11[%c0_57, %c0_58, %c0_59] : memref<1x1x128xf32, #tpu.memory_space<vmem>>, vector<1x1x128xf32>
      tpu.vector_store %arg11[%c0_57, %c0_58, %c0_59], %101 {strides = array<i32>} : memref<1x1x128xf32, #tpu.memory_space<vmem>>, vector<1x1x128xf32>,
      %cst_60 = arith.constant 0.000000e+00 : f32
      %103 = vector.broadcast %cst_60 : f32 to vector<1x1x128xf32>
      %c0_61 = arith.constant 0 : index
      %c0_62 = arith.constant 0 : index
      %c0_63 = arith.constant 0 : index
      %104 = vector.load %arg12[%c0_61, %c0_62, %c0_63] : memref<1x1x128xf32, #tpu.memory_space<vmem>>, vector<1x1x128xf32>
      tpu.vector_store %arg12[%c0_61, %c0_62, %c0_63], %103 {strides = array<i32>} : memref<1x1x128xf32, #tpu.memory_space<vmem>>, vector<1x1x128xf32>,
    } else {
    }
    %c0_20 = arith.constant 0 : index
    %c0_21 = arith.constant 0 : index
    %c0_22 = arith.constant 0 : index
    %71 = vector.load %arg9[%c0_20, %c0_21, %c0_22] : memref<1x1x128xf32, #tpu.memory_space<vmem>>, vector<1x1x128xf32>
    %cst_23 = arith.constant dense<0.000000e+00> : vector<128xf32>
    %72 = vector.multi_reduction <add>, %64, %cst_23 [0] : vector<16x128xf32> to vector<128xf32>
    %73 = vector.shape_cast %72 : vector<128xf32> to vector<1x128xf32>
    %74 = vector.shape_cast %73 : vector<1x128xf32> to vector<1x1x128xf32>
    %75 = arith.addf %71, %74 : vector<1x1x128xf32>
    %c0_24 = arith.constant 0 : index
    %c0_25 = arith.constant 0 : index
    %c0_26 = arith.constant 0 : index
    %76 = vector.load %arg9[%c0_24, %c0_25, %c0_26] : memref<1x1x128xf32, #tpu.memory_space<vmem>>, vector<1x1x128xf32>
    tpu.vector_store %arg9[%c0_24, %c0_25, %c0_26], %75 {strides = array<i32>} : memref<1x1x128xf32, #tpu.memory_space<vmem>>, vector<1x1x128xf32>,
    %c0_27 = arith.constant 0 : index
    %c0_28 = arith.constant 0 : index
    %c0_29 = arith.constant 0 : index
    %77 = vector.load %arg10[%c0_27, %c0_28, %c0_29] : memref<1x1x128xf32, #tpu.memory_space<vmem>>, vector<1x1x128xf32>
    %78 = arith.mulf %64, %64 : vector<16x128xf32>
    %cst_30 = arith.constant dense<0.000000e+00> : vector<128xf32>
    %79 = vector.multi_reduction <add>, %78, %cst_30 [0] : vector<16x128xf32> to vector<128xf32>
    %80 = vector.shape_cast %79 : vector<128xf32> to vector<1x128xf32>
    %81 = vector.shape_cast %80 : vector<1x128xf32> to vector<1x1x128xf32>
    %82 = arith.addf %77, %81 : vector<1x1x128xf32>
    %c0_31 = arith.constant 0 : index
    %c0_32 = arith.constant 0 : index
    %c0_33 = arith.constant 0 : index
    %83 = vector.load %arg10[%c0_31, %c0_32, %c0_33] : memref<1x1x128xf32, #tpu.memory_space<vmem>>, vector<1x1x128xf32>
    tpu.vector_store %arg10[%c0_31, %c0_32, %c0_33], %82 {strides = array<i32>} : memref<1x1x128xf32, #tpu.memory_space<vmem>>, vector<1x1x128xf32>,
    %c0_34 = arith.constant 0 : index
    %c0_35 = arith.constant 0 : index
    %c0_36 = arith.constant 0 : index
    %84 = vector.load %arg11[%c0_34, %c0_35, %c0_36] : memref<1x1x128xf32, #tpu.memory_space<vmem>>, vector<1x1x128xf32>
    %cst_37 = arith.constant dense<0.000000e+00> : vector<128xf32>
    %85 = vector.multi_reduction <add>, %67, %cst_37 [0] : vector<16x128xf32> to vector<128xf32>
    %86 = vector.shape_cast %85 : vector<128xf32> to vector<1x128xf32>
    %87 = vector.shape_cast %86 : vector<1x128xf32> to vector<1x1x128xf32>
    %88 = arith.addf %84, %87 : vector<1x1x128xf32>
    %c0_38 = arith.constant 0 : index
    %c0_39 = arith.constant 0 : index
    %c0_40 = arith.constant 0 : index
    %89 = vector.load %arg11[%c0_38, %c0_39, %c0_40] : memref<1x1x128xf32, #tpu.memory_space<vmem>>, vector<1x1x128xf32>
    tpu.vector_store %arg11[%c0_38, %c0_39, %c0_40], %88 {strides = array<i32>} : memref<1x1x128xf32, #tpu.memory_space<vmem>>, vector<1x1x128xf32>,
    %c0_41 = arith.constant 0 : index
    %c0_42 = arith.constant 0 : index
    %c0_43 = arith.constant 0 : index
    %90 = vector.load %arg12[%c0_41, %c0_42, %c0_43] : memref<1x1x128xf32, #tpu.memory_space<vmem>>, vector<1x1x128xf32>
    %91 = arith.mulf %67, %67 : vector<16x128xf32>
    %cst_44 = arith.constant dense<0.000000e+00> : vector<128xf32>
    %92 = vector.multi_reduction <add>, %91, %cst_44 [0] : vector<16x128xf32> to vector<128xf32>
    %93 = vector.shape_cast %92 : vector<128xf32> to vector<1x128xf32>
    %94 = vector.shape_cast %93 : vector<1x128xf32> to vector<1x1x128xf32>
    %95 = arith.addf %90, %94 : vector<1x1x128xf32>
    %c0_45 = arith.constant 0 : index
    %c0_46 = arith.constant 0 : index
    %c0_47 = arith.constant 0 : index
    %96 = vector.load %arg12[%c0_45, %c0_46, %c0_47] : memref<1x1x128xf32, #tpu.memory_space<vmem>>, vector<1x1x128xf32>
    tpu.vector_store %arg12[%c0_45, %c0_46, %c0_47], %95 {strides = array<i32>} : memref<1x1x128xf32, #tpu.memory_space<vmem>>, vector<1x1x128xf32>,
    return
  }
  func.func @transform_0(%arg0: i32, %arg1: i32) -> i32 {
    %c0_i32 = arith.constant 0 : i32
    %c0_i32_0 = arith.constant 0 : i32
    return %c0_i32 : i32
  }
  func.func @transform_1(%arg0: i32, %arg1: i32) -> (i32, i32) {
    %c1_i32 = arith.constant 1 : i32
    %0 = arith.muli %arg0, %c1_i32 : i32
    %1 = arith.addi %0, %arg1 : i32
    %c0_i32 = arith.constant 0 : i32
    %c0_i32_0 = arith.constant 0 : i32
    return %1, %c0_i32 : i32, i32
  }
  func.func @transform_2(%arg0: i32, %arg1: i32) -> (i32, i32) {
    %c0_i32 = arith.constant 0 : i32
    %c0_i32_0 = arith.constant 0 : i32
    %c0_i32_1 = arith.constant 0 : i32
    return %c0_i32, %c0_i32_0 : i32, i32
  }
  func.func @transform_3(%arg0: i32, %arg1: i32) -> (i32, i32) {
    %c0_i32 = arith.constant 0 : i32
    %c0_i32_0 = arith.constant 0 : i32
    %c0_i32_1 = arith.constant 0 : i32
    return %c0_i32, %c0_i32_0 : i32, i32
  }
  func.func @transform_4(%arg0: i32, %arg1: i32) -> (i32, i32) {
    %c0_i32 = arith.constant 0 : i32
    %c0_i32_0 = arith.constant 0 : i32
    %c0_i32_1 = arith.constant 0 : i32
    return %c0_i32, %c0_i32_0 : i32, i32
  }
  func.func @transform_5(%arg0: i32, %arg1: i32) -> (i32, i32) {
    %c0_i32 = arith.constant 0 : i32
    %c0_i32_0 = arith.constant 0 : i32
    %c0_i32_1 = arith.constant 0 : i32
    return %c0_i32, %c0_i32_0 : i32, i32
  }
  func.func @transform_6(%arg0: i32, %arg1: i32) -> (i32, i32) {
    %c1_i32 = arith.constant 1 : i32
    %0 = arith.muli %arg0, %c1_i32 : i32
    %1 = arith.addi %0, %arg1 : i32
    %c0_i32 = arith.constant 0 : i32
    %c0_i32_0 = arith.constant 0 : i32
    return %1, %c0_i32 : i32, i32
  }
  func.func @transform_7(%arg0: i32, %arg1: i32) -> (i32, i32, i32) {
    %c0_i32 = arith.constant 0 : i32
    %c0_i32_0 = arith.constant 0 : i32
    %c0_i32_1 = arith.constant 0 : i32
    return %arg0, %c0_i32, %c0_i32_0 : i32, i32, i32
  }
  func.func @transform_8(%arg0: i32, %arg1: i32) -> (i32, i32, i32) {
    %c0_i32 = arith.constant 0 : i32
    %c0_i32_0 = arith.constant 0 : i32
    %c0_i32_1 = arith.constant 0 : i32
    return %arg0, %c0_i32, %c0_i32_0 : i32, i32, i32
  }
  func.func @transform_9(%arg0: i32, %arg1: i32) -> (i32, i32, i32) {
    %c0_i32 = arith.constant 0 : i32
    %c0_i32_0 = arith.constant 0 : i32
    %c0_i32_1 = arith.constant 0 : i32
    return %arg0, %c0_i32, %c0_i32_0 : i32, i32, i32
  }
  func.func @transform_10(%arg0: i32, %arg1: i32) -> (i32, i32, i32) {
    %c0_i32 = arith.constant 0 : i32
    %c0_i32_0 = arith.constant 0 : i32
    %c0_i32_1 = arith.constant 0 : i32
    return %arg0, %c0_i32, %c0_i32_0 : i32, i32, i32
  }
}

</mosaic_0001>

<llo_original>
// kernel: tpu_custom_call.1
$region0: #{tpu_custom_call.1}
  #allocation0 [shape = 'u32[]', space=smem, size = 0x4, offset = 0x4, fixed_abs, tag = 'smem constant byte address 0x4 - core index']
  #allocation1 [shape = 'u32[144,128]{1,0:T(1,128)}', space=vmem, size = 0x12000, scoped, tag = 'internal scratch']
  #allocation2 [shape = 's32[1]{0:T(128)S(6)}', space=smem, size = 0x200, scoped, tag = 'scoped memory for tpu_custom_call.1']
  %s0 = inlined_call_operand.<no memory space> [shape: s32[1], index: 0, kind: input, shape index: {}]
  %s1 = inlined_call_operand.hbm [shape: bf16[32,128], index: 1, kind: input, shape index: {}]
  %s2 = inlined_call_operand.hbm [shape: bf16[128,128], index: 2, kind: input, shape index: {}]
  %s3 = inlined_call_operand.hbm [shape: f32[1,128], index: 3, kind: input, shape index: {}]
  %s4 = inlined_call_operand.hbm [shape: bf16[128,128], index: 4, kind: input, shape index: {}]
  %s5 = inlined_call_operand.hbm [shape: f32[1,128], index: 5, kind: input, shape index: {}]
  %s6 = inlined_call_operand.hbm [shape: bf16[32,128], index: 6, kind: output, shape index: {0}]
  %s7 = inlined_call_operand.hbm [shape: f32[2,1,128], index: 7, kind: output, shape index: {1}]
  %s8 = inlined_call_operand.hbm [shape: f32[2,1,128], index: 8, kind: output, shape index: {2}]
  %s9 = inlined_call_operand.hbm [shape: f32[2,1,128], index: 9, kind: output, shape index: {3}]
  %s10 = inlined_call_operand.hbm [shape: f32[2,1,128], index: 10, kind: output, shape index: {4}]
  %11 = xla_tuple %s6, %s7, %s8, %s9, %s10
  %s12 = sld [smem:[#allocation0]]
  $region113: #{tpu_custom_call.1} parent=0
    _
  %s14 = ssub.s32 1, %s12
  %s15 = scalar_select 0, %s14, %s12
  %16 = sst [smem:[#allocation2]] %s0
  $region1: #{tpu_custom_call.1} parent=0
    #allocation3 [shape = 'u8[8192]{0}', space=vmem, size = 0x2000, scoped, tag = 'input window, operand 1']
    #allocation4 [shape = 's32[2]{0}', space=sflag, size = 0x8, scoped, tag = 'scoped memory for tpu_custom_call.1']
    #allocation5 [shape = 's32[2]{0}', space=sflag, size = 0x8, scoped, tag = 'scoped memory for tpu_custom_call.1']
    #allocation6 [shape = 'u8[32768]{0}', space=vmem, size = 0x8000, scoped, tag = 'input window, operand 2, single buffered']
    #allocation7 [shape = 's32[1]{0}', space=sflag, size = 0x4, scoped, tag = 'scoped memory for tpu_custom_call.1']
    #allocation8 [shape = 'u8[512]{0}', space=vmem, size = 0x400, scoped, tag = 'input window, operand 3, single buffered']
    #allocation9 [shape = 'u8[32768]{0}', space=vmem, size = 0x8000, scoped, tag = 'input window, operand 4, single buffered']
    #allocation10 [shape = 's32[1]{0}', space=sflag, size = 0x4, scoped, tag = 'scoped memory for tpu_custom_call.1']
    #allocation11 [shape = 'u8[512]{0}', space=vmem, size = 0x400, scoped, tag = 'input window, operand 5, single buffered']
    #allocation12 [shape = 'u8[8192]{0}', space=vmem, size = 0x2000, scoped, tag = 'output window, operand 0']
    #allocation13 [shape = 'u8[1024]{0}', space=vmem, size = 0x400, scoped, tag = 'output window, operand 1']
    #allocation14 [shape = 's32[2]{0}', space=sflag, size = 0x8, scoped, tag = 'scoped memory for tpu_custom_call.1']
    #allocation15 [shape = 'u8[1024]{0}', space=vmem, size = 0x400, scoped, tag = 'output window, operand 2']
    #allocation16 [shape = 'u8[1024]{0}', space=vmem, size = 0x400, scoped, tag = 'output window, operand 3']
    #allocation17 [shape = 's32[2]{0}', space=sflag, size = 0x8, scoped, tag = 'scoped memory for tpu_custom_call.1']
    #allocation18 [shape = 'u8[1024]{0}', space=vmem, size = 0x400, scoped, tag = 'output window, operand 4']
    %17 = vsyncpa [#allocation4], 0
    %s18 = scalar_lea.sflag [#allocation4], 1
    %19 = vsyncpa %s18, 0
    %20 = vsyncpa [#allocation7], 0
    %21 = vsyncpa [#allocation10], 0
    %22 = vsyncpa [#allocation5], 0
    %s23 = scalar_lea.sflag [#allocation5], 1
    %24 = vsyncpa %s23, 0
    %25 = vsyncpa [#allocation14], 0
    %s26 = scalar_lea.sflag [#allocation14], 1
    %27 = vsyncpa %s26, 0
    %28 = vsyncpa [#allocation17], 0
    %s29 = scalar_lea.sflag [#allocation17], 1
    %30 = vsyncpa %s29, 0
    loop: start=0, step=1, limit=4
    $region2: #{tpu_custom_call.1} parent=1 // loop_pre_header
      _
    $region3: #{tpu_custom_call.1} parent=1 // loop_header
      %s32 = sphi 0, %s36
      %p33 = scmp.ge.s32.totalorder %s32, 4
      %s39 = sphi 0, %s51
      %s40 = sphi 0, %s47
      %s41 = sphi 0, %s39
      %s42 = sphi 0, %s40
      %s43 = sphi 0, %s41
      %s44 = sphi 0, %s42
      %s52 = sphi 0, %s52
      %s54 = sphi 0, %s52
      %s55 = sphi 0, %s54
      %s69 = sphi 0, %s55
      %s77 = sphi 0, %s79
      %s80 = sphi 0, %s77
      %s81 = sphi 0, %s80
      %s97 = sphi 0, %s81
      %s101 = sphi 0, %s101
      %s103 = sphi 0, %s101
      %s104 = sphi 0, %s103
      %s118 = sphi 0, %s104
      %s122 = sphi 0, %s122
      %s124 = sphi 0, %s122
      %s125 = sphi 0, %s124
      %s139 = sphi 0, %s125
      %s143 = sphi 0, %s143
      %s145 = sphi 0, %s143
      %s146 = sphi 0, %s145
      %s160 = sphi 0, %s146
      %s164 = sphi 0, %s164
      %s166 = sphi 0, %s164
      %s167 = sphi 0, %s166
      %s181 = sphi 0, %s167
      %s189 = sphi 0, %s191
      %s192 = sphi 0, %s189
      %s193 = sphi 0, %s192
      %s209 = sphi 0, %s193
      %s215 = sphi 0, %s217
      %s218 = sphi 0, %s215
      %s219 = sphi 0, %s218
      %s235 = sphi 0, %s219
      %s241 = sphi 0, %s243
      %s244 = sphi 0, %s241
      %s245 = sphi 0, %s244
      %s261 = sphi 0, %s245
      %s267 = sphi 0, %s269
      %s270 = sphi 0, %s267
      %s271 = sphi 0, %s270
      %s287 = sphi 0, %s271
      %s293 = sphi 0, %s295
      %s296 = sphi 0, %s293
      %s297 = sphi 0, %s296
      %s313 = sphi 0, %s297
    $region4: #{tpu_custom_call.1} parent=1 // loop_header_branch
      %35 = sbr.rel (%p33) target = $region8
    $region5: #{tpu_custom_call.1} parent=1 // loop_body
      %s37 = ssub.s32 %s32, 1
      %s38 = ssub.s32 %s32, 2
      %s45 = sadd.s32 1, %s40
      %p46 = scmp.ge.s32.totalorder %s45, 1
      %s47 = scalar_select %p46, 0, %s45
      %s48 = sadd.s32 1, %s39
      %s49 = scalar_select %p46, %s48, %s39
      %p50 = scmp.ge.s32.totalorder %s49, 2
      %s51 = scalar_select %p50, 0, %s49
      %s53 = sadd.s32 %s52, 1
      %p56 = scmp.eq.s32.totalorder %s32, 1
      %p57 = scmp.ne.s32.totalorder %s52, %s54
      %p58 = scmp.eq.s32.totalorder %s32, 0
      %p59 = por %p57, %p58
      %p60 = scmp.ne.s32.totalorder %s52, %s54
      %p61 = scmp.eq.s32.totalorder %s37, 1
      %p62 = por %p60, %p61
      %p63 = scmp.ne.s32.totalorder %s54, %s55
      %p64 = scmp.eq.s32.totalorder %s37, 0
      %p65 = por %p63, %p64
      %p66 = scmp.ne.s32.totalorder %s54, %s55
      %p67 = scmp.eq.s32.totalorder %s38, 1
      %p68 = por %p66, %p67
      %p70 = scmp.ne.s32.totalorder %s55, %s69
      %p71 = scmp.eq.s32.totalorder %s38, 0
      %p72 = por %p70, %p71
      %s73 = sadd.s32 %s39, %s40
      %s74 = sadd.s32 %s51, %s47
      %s75 = ssub.s32 %s73, %s74
      %p76 = scmp.eq.s32.totalorder %s75, 0
      %s78 = sadd.s32 %s77, 1
      %s79 = scalar_select %p76, %s77, %s78
      %p82 = pneg %p76
      %p83 = scmp.eq.s32.totalorder %s32, 1
      %p84 = por %p82, %p83
      %p85 = scmp.ne.s32.totalorder %s77, %s80
      %p86 = scmp.eq.s32.totalorder %s32, 0
      %p87 = por %p85, %p86
      %p88 = scmp.ne.s32.totalorder %s77, %s80
      %p89 = scmp.eq.s32.totalorder %s37, 1
      %p90 = por %p88, %p89
      %p91 = scmp.ne.s32.totalorder %s80, %s81
      %p92 = scmp.eq.s32.totalorder %s37, 0
      %p93 = por %p91, %p92
      %p94 = scmp.ne.s32.totalorder %s80, %s81
      %p95 = scmp.eq.s32.totalorder %s38, 1
      %p96 = por %p94, %p95
      %p98 = scmp.ne.s32.totalorder %s81, %s97
      %p99 = scmp.eq.s32.totalorder %s38, 0
      %p100 = por %p98, %p99
      %s102 = sadd.s32 %s101, 1
      %p105 = scmp.eq.s32.totalorder %s32, 1
      %p106 = scmp.ne.s32.totalorder %s101, %s103
      %p107 = scmp.eq.s32.totalorder %s32, 0
      %p108 = por %p106, %p107
      %p109 = scmp.ne.s32.totalorder %s101, %s103
      %p110 = scmp.eq.s32.totalorder %s37, 1
      %p111 = por %p109, %p110
      %p112 = scmp.ne.s32.totalorder %s103, %s104
      %p113 = scmp.eq.s32.totalorder %s37, 0
      %p114 = por %p112, %p113
      %p115 = scmp.ne.s32.totalorder %s103, %s104
      %p116 = scmp.eq.s32.totalorder %s38, 1
      %p117 = por %p115, %p116
      %p119 = scmp.ne.s32.totalorder %s104, %s118
      %p120 = scmp.eq.s32.totalorder %s38, 0
      %p121 = por %p119, %p120
      %s123 = sadd.s32 %s122, 1
      %p126 = scmp.eq.s32.totalorder %s32, 1
      %p127 = scmp.ne.s32.totalorder %s122, %s124
      %p128 = scmp.eq.s32.totalorder %s32, 0
      %p129 = por %p127, %p128
      %p130 = scmp.ne.s32.totalorder %s122, %s124
      %p131 = scmp.eq.s32.totalorder %s37, 1
      %p132 = por %p130, %p131
      %p133 = scmp.ne.s32.totalorder %s124, %s125
      %p134 = scmp.eq.s32.totalorder %s37, 0
      %p135 = por %p133, %p134
      %p136 = scmp.ne.s32.totalorder %s124, %s125
      %p137 = scmp.eq.s32.totalorder %s38, 1
      %p138 = por %p136, %p137
      %p140 = scmp.ne.s32.totalorder %s125, %s139
      %p141 = scmp.eq.s32.totalorder %s38, 0
      %p142 = por %p140, %p141
      %s144 = sadd.s32 %s143, 1
      %p147 = scmp.eq.s32.totalorder %s32, 1
      %p148 = scmp.ne.s32.totalorder %s143, %s145
      %p149 = scmp.eq.s32.totalorder %s32, 0
      %p150 = por %p148, %p149
      %p151 = scmp.ne.s32.totalorder %s143, %s145
      %p152 = scmp.eq.s32.totalorder %s37, 1
      %p153 = por %p151, %p152
      %p154 = scmp.ne.s32.totalorder %s145, %s146
      %p155 = scmp.eq.s32.totalorder %s37, 0
      %p156 = por %p154, %p155
      %p157 = scmp.ne.s32.totalorder %s145, %s146
      %p158 = scmp.eq.s32.totalorder %s38, 1
      %p159 = por %p157, %p158
      %p161 = scmp.ne.s32.totalorder %s146, %s160
      %p162 = scmp.eq.s32.totalorder %s38, 0
      %p163 = por %p161, %p162
      %s165 = sadd.s32 %s164, 1
      %p168 = scmp.eq.s32.totalorder %s32, 1
      %p169 = scmp.ne.s32.totalorder %s164, %s166
      %p170 = scmp.eq.s32.totalorder %s32, 0
      %p171 = por %p169, %p170
      %p172 = scmp.ne.s32.totalorder %s164, %s166
      %p173 = scmp.eq.s32.totalorder %s37, 1
      %p174 = por %p172, %p173
      %p175 = scmp.ne.s32.totalorder %s166, %s167
      %p176 = scmp.eq.s32.totalorder %s37, 0
      %p177 = por %p175, %p176
      %p178 = scmp.ne.s32.totalorder %s166, %s167
      %p179 = scmp.eq.s32.totalorder %s38, 1
      %p180 = por %p178, %p179
      %p182 = scmp.ne.s32.totalorder %s167, %s181
      %p183 = scmp.eq.s32.totalorder %s38, 0
      %p184 = por %p182, %p183
      %s185 = sadd.s32 %s39, %s40
      %s186 = sadd.s32 %s51, %s47
      %s187 = ssub.s32 %s185, %s186
      %p188 = scmp.eq.s32.totalorder %s187, 0
      %s190 = sadd.s32 %s189, 1
      %s191 = scalar_select %p188, %s189, %s190
      %p194 = pneg %p188
      %p195 = scmp.eq.s32.totalorder %s32, 1
      %p196 = por %p194, %p195
      %p197 = scmp.ne.s32.totalorder %s189, %s192
      %p198 = scmp.eq.s32.totalorder %s32, 0
      %p199 = por %p197, %p198
      %p200 = scmp.ne.s32.totalorder %s189, %s192
      %p201 = scmp.eq.s32.totalorder %s37, 1
      %p202 = por %p200, %p201
      %p203 = scmp.ne.s32.totalorder %s192, %s193
      %p204 = scmp.eq.s32.totalorder %s37, 0
      %p205 = por %p203, %p204
      %p206 = scmp.ne.s32.totalorder %s192, %s193
      %p207 = scmp.eq.s32.totalorder %s38, 1
      %p208 = por %p206, %p207
      %p210 = scmp.ne.s32.totalorder %s193, %s209
      %p211 = scmp.eq.s32.totalorder %s38, 0
      %p212 = por %p210, %p211
      %s213 = ssub.s32 %s39, %s51
      %p214 = scmp.eq.s32.totalorder %s213, 0
      %s216 = sadd.s32 %s215, 1
      %s217 = scalar_select %p214, %s215, %s216
      %p220 = pneg %p214
      %p221 = scmp.eq.s32.totalorder %s32, 1
      %p222 = por %p220, %p221
      %p223 = scmp.ne.s32.totalorder %s215, %s218
      %p224 = scmp.eq.s32.totalorder %s32, 0
      %p225 = por %p223, %p224
      %p226 = scmp.ne.s32.totalorder %s215, %s218
      %p227 = scmp.eq.s32.totalorder %s37, 1
      %p228 = por %p226, %p227
      %p229 = scmp.ne.s32.totalorder %s218, %s219
      %p230 = scmp.eq.s32.totalorder %s37, 0
      %p231 = por %p229, %p230
      %p232 = scmp.ne.s32.totalorder %s218, %s219
      %p233 = scmp.eq.s32.totalorder %s38, 1
      %p234 = por %p232, %p233
      %p236 = scmp.ne.s32.totalorder %s219, %s235
      %p237 = scmp.eq.s32.totalorder %s38, 0
      %p238 = por %p236, %p237
      %s239 = ssub.s32 %s39, %s51
      %p240 = scmp.eq.s32.totalorder %s239, 0
      %s242 = sadd.s32 %s241, 1
      %s243 = scalar_select %p240, %s241, %s242
      %p246 = pneg %p240
      %p247 = scmp.eq.s32.totalorder %s32, 1
      %p248 = por %p246, %p247
      %p249 = scmp.ne.s32.totalorder %s241, %s244
      %p250 = scmp.eq.s32.totalorder %s32, 0
      %p251 = por %p249, %p250
      %p252 = scmp.ne.s32.totalorder %s241, %s244
      %p253 = scmp.eq.s32.totalorder %s37, 1
      %p254 = por %p252, %p253
      %p255 = scmp.ne.s32.totalorder %s244, %s245
      %p256 = scmp.eq.s32.totalorder %s37, 0
      %p257 = por %p255, %p256
      %p258 = scmp.ne.s32.totalorder %s244, %s245
      %p259 = scmp.eq.s32.totalorder %s38, 1
      %p260 = por %p258, %p259
      %p262 = scmp.ne.s32.totalorder %s245, %s261
      %p263 = scmp.eq.s32.totalorder %s38, 0
      %p264 = por %p262, %p263
      %s265 = ssub.s32 %s39, %s51
      %p266 = scmp.eq.s32.totalorder %s265, 0
      %s268 = sadd.s32 %s267, 1
      %s269 = scalar_select %p266, %s267, %s268
      %p272 = pneg %p266
      %p273 = scmp.eq.s32.totalorder %s32, 1
      %p274 = por %p272, %p273
      %p275 = scmp.ne.s32.totalorder %s267, %s270
      %p276 = scmp.eq.s32.totalorder %s32, 0
      %p277 = por %p275, %p276
      %p278 = scmp.ne.s32.totalorder %s267, %s270
      %p279 = scmp.eq.s32.totalorder %s37, 1
      %p280 = por %p278, %p279
      %p281 = scmp.ne.s32.totalorder %s270, %s271
      %p282 = scmp.eq.s32.totalorder %s37, 0
      %p283 = por %p281, %p282
      %p284 = scmp.ne.s32.totalorder %s270, %s271
      %p285 = scmp.eq.s32.totalorder %s38, 1
      %p286 = por %p284, %p285
      %p288 = scmp.ne.s32.totalorder %s271, %s287
      %p289 = scmp.eq.s32.totalorder %s38, 0
      %p290 = por %p288, %p289
      %s291 = ssub.s32 %s39, %s51
      %p292 = scmp.eq.s32.totalorder %s291, 0
      %s294 = sadd.s32 %s293, 1
      %s295 = scalar_select %p292, %s293, %s294
      %p298 = pneg %p292
      %p299 = scmp.eq.s32.totalorder %s32, 1
      %p300 = por %p298, %p299
      %p301 = scmp.ne.s32.totalorder %s293, %s296
      %p302 = scmp.eq.s32.totalorder %s32, 0
      %p303 = por %p301, %p302
      %p304 = scmp.ne.s32.totalorder %s293, %s296
      %p305 = scmp.eq.s32.totalorder %s37, 1
      %p306 = por %p304, %p305
      %p307 = scmp.ne.s32.totalorder %s296, %s297
      %p308 = scmp.eq.s32.totalorder %s37, 0
      %p309 = por %p307, %p308
      %p310 = scmp.ne.s32.totalorder %s296, %s297
      %p311 = scmp.eq.s32.totalorder %s38, 1
      %p312 = por %p310, %p311
      %p314 = scmp.ne.s32.totalorder %s297, %s313
      %p315 = scmp.eq.s32.totalorder %s38, 0
      %p316 = por %p314, %p315
      %p317 = scmp.le.s32.totalorder 1, %s32
      %p318 = scmp.lt.s32.totalorder %s32, 3
      %p319 = pnand %p317, %p318
      %p320 = pneg %p319
      // Predicated region
      $region9: #{tpu_custom_call.1} parent=5 // pred_check
        _
      $region10: #{tpu_custom_call.1} parent=5 // pred_check_branch
        %322 = sbr.rel (%p319) target = $region12
      $region11: #{tpu_custom_call.1} parent=5 // pred_region
        %s323 = ssub.s32 %s32, 1
        // Predicated region
        $region13: #{tpu_custom_call.1} parent=11 // pred_check
          %p324 = pneg %p65
        $region14: #{tpu_custom_call.1} parent=11 // pred_check_branch
          %326 = sbr.rel (%p324) target = $region16
        $region15: #{tpu_custom_call.1} parent=11 // pred_region
          _
        $region16: #{tpu_custom_call.1} parent=11 // pred_fallthru
          _
        // Predicated region
        $region17: #{tpu_custom_call.1} parent=11 // pred_check
          %p327 = pneg %p114
        $region18: #{tpu_custom_call.1} parent=11 // pred_check_branch
          %329 = sbr.rel (%p327) target = $region20
        $region19: #{tpu_custom_call.1} parent=11 // pred_region
          %s331 = ssub.s32 1024, 1024
          %332 = vsyncadd [#allocation7], %s331
          %s333 = sshll.u32 [#allocation6], 4
          %s334 = int_to_ptr.vmem [resolvable:$true] %s333
          %339 = dma.hbm_to_vmem [thread:$0]  %s2, 1024, %s334, [#allocation7], 64, 64, 4
        $region20: #{tpu_custom_call.1} parent=11 // pred_fallthru
          _
        // Predicated region
        $region21: #{tpu_custom_call.1} parent=11 // pred_check
          %p340 = pneg %p135
        $region22: #{tpu_custom_call.1} parent=11 // pred_check_branch
          %342 = sbr.rel (%p340) target = $region24
        $region23: #{tpu_custom_call.1} parent=11 // pred_region
          %s344 = ssub.s32 16, 16
          %345 = vsyncadd [#allocation7], %s344
          %s347 = sshll.u32 [#allocation8], 4
          %s348 = int_to_ptr.vmem [resolvable:$true] %s347
          %350 = dma.hbm_to_vmem [thread:$0]  %s3, 16, %s348, [#allocation7]
        $region24: #{tpu_custom_call.1} parent=11 // pred_fallthru
          _
        // Predicated region
        $region25: #{tpu_custom_call.1} parent=11 // pred_check
          %p351 = pneg %p156
        $region26: #{tpu_custom_call.1} parent=11 // pred_check_branch
          %353 = sbr.rel (%p351) target = $region28
        $region27: #{tpu_custom_call.1} parent=11 // pred_region
          %s355 = ssub.s32 1024, 1024
          %356 = vsyncadd [#allocation10], %s355
          %s357 = sshll.u32 [#allocation9], 4
          %s358 = int_to_ptr.vmem [resolvable:$true] %s357
          %363 = dma.hbm_to_vmem [thread:$0]  %s4, 1024, %s358, [#allocation10], 64, 64, 4
        $region28: #{tpu_custom_call.1} parent=11 // pred_fallthru
          _
        // Predicated region
        $region29: #{tpu_custom_call.1} parent=11 // pred_check
          %p364 = pneg %p177
        $region30: #{tpu_custom_call.1} parent=11 // pred_check_branch
          %366 = sbr.rel (%p364) target = $region32
        $region31: #{tpu_custom_call.1} parent=11 // pred_region
          %s368 = ssub.s32 16, 16
          %369 = vsyncadd [#allocation10], %s368
          %s371 = sshll.u32 [#allocation11], 4
          %s372 = int_to_ptr.vmem [resolvable:$true] %s371
          %374 = dma.hbm_to_vmem [thread:$0]  %s5, 16, %s372, [#allocation10]
        $region32: #{tpu_custom_call.1} parent=11 // pred_fallthru
          _
      $region12: #{tpu_custom_call.1} parent=5 // pred_fallthru
        _
      %p375 = scmp.lt.s32.totalorder %s32, 2
      // Predicated region
      $region33: #{tpu_custom_call.1} parent=5 // pred_check
        %p376 = pneg %p375
      $region34: #{tpu_custom_call.1} parent=5 // pred_check_branch
        %378 = sbr.rel (%p376) target = $region36
      $region35: #{tpu_custom_call.1} parent=5 // pred_region
        // Predicated region
        $region37: #{tpu_custom_call.1} parent=35 // pred_check
          %p379 = pneg %p87
        $region38: #{tpu_custom_call.1} parent=35 // pred_check_branch
          %381 = sbr.rel (%p379) target = $region40
        $region39: #{tpu_custom_call.1} parent=35 // pred_region
          %s382 = sand.u32 %s77, 1
          %s383 = scalar_lea.sflag [#allocation4], %s382
          %s384 = sand.u32 %s77, 1
          %s385 = smul.addr %s384, 8
          %s386 = scalar_lea.vmem [#allocation3], %s385
          %s387 = sadd.s32 %s39, %s40
          %s388 = smul.u32 2, %s387
          %s390 = ssub.s32 128, 128
          %391 = vsyncadd %s383, %s390
          %s392 = smul.addr %s388, 64
          %s393 = scalar_lea.hbm %s1, %s392
          %s394 = sshll.u32 %s386, 4
          %s395 = int_to_ptr.vmem [resolvable:$true] %s394
          %400 = dma.hbm_to_vmem [thread:$0]  %s393, 128, %s395, %s383, 64, 64, 4
        $region40: #{tpu_custom_call.1} parent=35 // pred_fallthru
          _
      $region36: #{tpu_custom_call.1} parent=5 // pred_fallthru
        _
      %p401 = scmp.le.s32.totalorder 1, %s32
      %p402 = scmp.lt.s32.totalorder %s32, 3
      %p403 = pnand %p401, %p402
      %p404 = pneg %p403
      // Predicated region
      $region41: #{tpu_custom_call.1} parent=5 // pred_check
        _
      $region42: #{tpu_custom_call.1} parent=5 // pred_check_branch
        %406 = sbr.rel (%p403) target = $region44
      $region43: #{tpu_custom_call.1} parent=5 // pred_region
        %s407 = ssub.s32 %s32, 1
        %s408 = sand.u32 %s80, 1
        %s409 = scalar_lea.sflag [#allocation4], %s408
        %s410 = sand.u32 %s80, 1
        %s411 = smul.addr %s410, 8
        %s412 = scalar_lea.vmem [#allocation3], %s411
        // Predicated region
        $region45: #{tpu_custom_call.1} parent=43 // pred_check
          %p413 = pneg %p93
        $region46: #{tpu_custom_call.1} parent=43 // pred_check_branch
          %415 = sbr.rel (%p413) target = $region48
        $region47: #{tpu_custom_call.1} parent=43 // pred_region
          %416 = dma.done %s409, 128
        $region48: #{tpu_custom_call.1} parent=43 // pred_fallthru
          _
        // Predicated region
        $region49: #{tpu_custom_call.1} parent=43 // pred_check
          %p417 = pneg %p114
        $region50: #{tpu_custom_call.1} parent=43 // pred_check_branch
          %419 = sbr.rel (%p417) target = $region52
        $region51: #{tpu_custom_call.1} parent=43 // pred_region
          %420 = dma.done [#allocation7], 1024
        $region52: #{tpu_custom_call.1} parent=43 // pred_fallthru
          _
        // Predicated region
        $region53: #{tpu_custom_call.1} parent=43 // pred_check
          %p421 = pneg %p135
        $region54: #{tpu_custom_call.1} parent=43 // pred_check_branch
          %423 = sbr.rel (%p421) target = $region56
        $region55: #{tpu_custom_call.1} parent=43 // pred_region
          %424 = dma.done [#allocation7], 16
        $region56: #{tpu_custom_call.1} parent=43 // pred_fallthru
          _
        // Predicated region
        $region57: #{tpu_custom_call.1} parent=43 // pred_check
          %p425 = pneg %p156
        $region58: #{tpu_custom_call.1} parent=43 // pred_check_branch
          %427 = sbr.rel (%p425) target = $region60
        $region59: #{tpu_custom_call.1} parent=43 // pred_region
          %428 = dma.done [#allocation10], 1024
        $region60: #{tpu_custom_call.1} parent=43 // pred_fallthru
          _
        // Predicated region
        $region61: #{tpu_custom_call.1} parent=43 // pred_check
          %p429 = pneg %p177
        $region62: #{tpu_custom_call.1} parent=43 // pred_check_branch
          %431 = sbr.rel (%p429) target = $region64
        $region63: #{tpu_custom_call.1} parent=43 // pred_region
          %432 = dma.done [#allocation10], 16
        $region64: #{tpu_custom_call.1} parent=43 // pred_fallthru
          _
        %p433 = pneg %p65
        %p434 = pneg %p62
        %s435 = sand.u32 %s80, 1
        %s436 = scalar_lea.sflag [#allocation4], %s435
        %s437 = sand.u32 %s80, 1
        %s438 = smul.addr %s437, 8
        %s439 = scalar_lea.vmem [#allocation3], %s438
        %p440 = pneg %p93
        %p441 = pneg %p90
        %p442 = pneg %p114
        %p443 = pneg %p111
        %p444 = pneg %p135
        %p445 = pneg %p132
        %p446 = pneg %p156
        %p447 = pneg %p153
        %p448 = pneg %p177
        %p449 = pneg %p174
        %p450 = pneg %p205
        %p451 = pneg %p202
        %s452 = sand.u32 %s192, 1
        %s453 = scalar_lea.sflag [#allocation5], %s452
        %s454 = sand.u32 %s192, 1
        %s455 = smul.addr %s454, 8
        %s456 = scalar_lea.vmem [#allocation12], %s455
        %p457 = pneg %p231
        %p458 = pneg %p228
        %s459 = sand.u32 %s37, 1
        %s460 = scalar_lea.sflag [#allocation14], %s459
        %s461 = sand.u32 %s218, 1
        %s462 = scalar_lea.vmem [#allocation13], %s461
        %p463 = pneg %p257
        %p464 = pneg %p254
        %s465 = sand.u32 %s37, 1
        %s466 = scalar_lea.sflag [#allocation14], %s465
        %s467 = sand.u32 %s244, 1
        %s468 = scalar_lea.vmem [#allocation15], %s467
        %p469 = pneg %p283
        %p470 = pneg %p280
        %s471 = sand.u32 %s37, 1
        %s472 = scalar_lea.sflag [#allocation17], %s471
        %s473 = sand.u32 %s270, 1
        %s474 = scalar_lea.vmem [#allocation16], %s473
        %p475 = pneg %p309
        %p476 = pneg %p306
        %s477 = sand.u32 %s37, 1
        %s478 = scalar_lea.sflag [#allocation17], %s477
        %s479 = sand.u32 %s296, 1
        %s480 = scalar_lea.vmem [#allocation18], %s479
        %s481 = sadd.s32 %s41, %s42
        %s482 = smul.u32 2, %s481
        %s483 = sadd.s32 %s41, %s42
        %s484 = smul.u32 2, %s483
        %s486 = sadd.s32 %s41, %s42
        %s487 = smul.u32 %s486, 16
        %v488 = vld [vmem:[%s412] sm:$0xf]
        %v489 = vld [vmem:[%s412 + $0x4] sm:$0xf]
        %v490 = vld [vmem:[#allocation6] sm:$0xf]
        %v491 = vld [vmem:[#allocation6 + $0x4] sm:$0xf]
        %v492 = vld [vmem:[#allocation6 + $0x8] sm:$0xf]
        %v493 = vld [vmem:[#allocation6 + $0xc] sm:$0xf]
        %v494 = vld [vmem:[#allocation6 + $0x10] sm:$0xf]
        %v495 = vld [vmem:[#allocation6 + $0x14] sm:$0xf]
        %v496 = vld [vmem:[#allocation6 + $0x18] sm:$0xf]
        %v497 = vld [vmem:[#allocation6 + $0x1c] sm:$0xf]
        %v498 = vld [vmem:[#allocation6 + $0x20] sm:$0xf]
        %v499 = vld [vmem:[#allocation6 + $0x24] sm:$0xf]
        %v500 = vld [vmem:[#allocation6 + $0x28] sm:$0xf]
        %v501 = vld [vmem:[#allocation6 + $0x2c] sm:$0xf]
        %v502 = vld [vmem:[#allocation6 + $0x30] sm:$0xf]
        %v503 = vld [vmem:[#allocation6 + $0x34] sm:$0xf]
        %v504 = vld [vmem:[#allocation6 + $0x38] sm:$0xf]
        %v505 = vld [vmem:[#allocation6 + $0x3c] sm:$0xf]
        %v506 = vld [vmem:[#allocation8] sm:$0x1]
        %v508 = vlaneseq
        %v509 = vshrl.u32 %v508, 7
        %v510 = vsub.s32 0, %v509
        %v511 = vrot.slane %v506, %v510
        %v515 = vunpack.c.l.b16 %v488
        %v516 = vunpack.c.l.b16 %v489
        %v517 = vpack.c.b16 %v516, %v515
        %v535 = vunpack.c.l.b16 %v490
        %v536 = vunpack.c.l.b16 %v491
        %v537 = vunpack.c.l.b16 %v492
        %v538 = vunpack.c.l.b16 %v493
        %v539 = vunpack.c.l.b16 %v494
        %v540 = vunpack.c.l.b16 %v495
        %v541 = vunpack.c.l.b16 %v496
        %v542 = vunpack.c.l.b16 %v497
        %v543 = vunpack.c.l.b16 %v498
        %v544 = vunpack.c.l.b16 %v499
        %v545 = vunpack.c.l.b16 %v500
        %v546 = vunpack.c.l.b16 %v501
        %v547 = vunpack.c.l.b16 %v502
        %v548 = vunpack.c.l.b16 %v503
        %v549 = vunpack.c.l.b16 %v504
        %v550 = vunpack.c.l.b16 %v505
        %v551 = vpack.c.b16 %v536, %v535
        %v552 = vpack.c.b16 %v538, %v537
        %v553 = vpack.c.b16 %v540, %v539
        %v554 = vpack.c.b16 %v542, %v541
        %v555 = vpack.c.b16 %v544, %v543
        %v556 = vpack.c.b16 %v546, %v545
        %v557 = vpack.c.b16 %v548, %v547
        %v558 = vpack.c.b16 %v550, %v549
        %567 = vmatprep.subr.bf16.mxu0 0
        %568 = vmatpush1.bf16.msra.mxu0 %v551
        %569 = vmatprep.subr.bf16.mxu0 0
        %570 = vmatpush1.bf16.msra.mxu0 %v552
        %571 = vmatprep.subr.bf16.mxu0 0
        %572 = vmatpush1.bf16.msra.mxu0 %v553
        %573 = vmatprep.subr.bf16.mxu0 0
        %574 = vmatpush1.bf16.msra.mxu0 %v554
        %575 = vmatprep.subr.bf16.mxu0 0
        %576 = vmatpush1.bf16.msra.mxu0 %v555
        %577 = vmatprep.subr.bf16.mxu0 0
        %578 = vmatpush1.bf16.msra.mxu0 %v556
        %579 = vmatprep.subr.bf16.mxu0 0
        %580 = vmatpush1.bf16.msra.mxu0 %v557
        %581 = vmatprep.subr.bf16.mxu0 0
        %582 = vmatpush1.bf16.msra.mxu0 %v558
        %583 = vmatprep.subr.bf16.mxu0 0
        %584 = vmatpush1.bf16.msra.mxu0 0
        %585 = vmatprep.subr.bf16.mxu0 0
        %586 = vmatpush1.bf16.msra.mxu0 0
        %587 = vmatprep.subr.bf16.mxu0 0
        %588 = vmatpush1.bf16.msra.mxu0 0
        %589 = vmatprep.subr.bf16.mxu0 0
        %590 = vmatpush1.bf16.msra.mxu0 0
        %591 = vmatprep.subr.bf16.mxu0 0
        %592 = vmatpush1.bf16.msra.mxu0 0
        %593 = vmatprep.subr.bf16.mxu0 0
        %594 = vmatpush1.bf16.msra.mxu0 0
        %595 = vmatprep.subr.bf16.mxu0 0
        %596 = vmatpush1.bf16.msra.mxu0 0
        %597 = vmatprep.subr.bf16.mxu0 0
        %598 = vmatpush1.bf16.msra.mxu0 0
        %599 = vmatprep.mubr.bf16.mxu0 0
        %600 = vmatmul.mubr.bf16.gmra.mrb[0].mxu0 %v517
        %v601 = vpop.f32.mrb[0].mxu0
        %v602 = vadd.f32 %v511, %v601
        %v603 = vpop.f32.mrb[0].mxu0
        %v604 = vpop.f32.mrb[0].mxu0
        %v605 = vadd.f32 %v511, %v604
        %v606 = vpop.f32.mrb[0].mxu0
        %607 = vdwg.mxu0
        %v608 = vmax.f32 %v602, 0.0
        %v609 = vmax.f32 %v605, 0.0
        %v610 = vpack.c.bf16 %v609, %v608
        %v612 = vunpack.c.l.b16 %v610
        %v613 = vunpack.c.h.b16 %v610
        %v614 = vpack.c.b16 %v612, %v612
        %v615 = vpack.c.b16 %v613, %v613
        %618 = vst [vmem:[%s456] sm:$0xf] %v614
        %619 = vst [vmem:[%s456 + $0x4] sm:$0xf] %v615
        %s620 = sld [smem:[#allocation2]]
        %v621 = vlaneseq
        %v622 = vshrl.u32 %v621, 7
        %v623 = vadd.s32 %v622, 8
        %v624 = vstv %s487
        %v625 = vadd.s32 %v624, %v622
        %v626 = vadd.s32 %v624, %v623
        %v627 = vlaneseq
        %v628 = vand.u32 %v627, 127
        %v629 = vmul.u32 %v625, 2654435769
        %v630 = vmul.u32 %v626, 2654435769
        %v631 = vmul.u32 %v628, 16777619
        %v632 = vadd.s32 %v629, %v631
        %v633 = vadd.s32 %v630, %v631
        %v634 = vstv %s620
        %v635 = vadd.s32 %v632, %v634
        %v636 = vadd.s32 %v633, %v634
        %v637 = vshrl.u32 %v635, 16
        %v638 = vshrl.u32 %v636, 16
        %v639 = vxor.u32 %v635, %v637
        %v640 = vxor.u32 %v636, %v638
        %v641 = vmul.u32 %v639, 2246822507
        %v642 = vmul.u32 %v640, 2246822507
        %v643 = vshrl.u32 %v641, 13
        %v644 = vshrl.u32 %v642, 13
        %v645 = vxor.u32 %v641, %v643
        %v646 = vxor.u32 %v642, %v644
        %v647 = vmul.u32 %v645, 3266489909
        %v648 = vmul.u32 %v646, 3266489909
        %v649 = vshrl.u32 %v647, 16
        %v650 = vshrl.u32 %v648, 16
        %v651 = vxor.u32 %v647, %v649
        %v652 = vxor.u32 %v648, %v650
        %v653 = vand.u32 %v651, 2147483647
        %v654 = vand.u32 %v652, 2147483647
        %vm655 = vcmp.lt.s32.totalorder %v653, 1073741824
        %vm656 = vcmp.lt.s32.totalorder %v654, 1073741824
        %v657 = vsel %vm655, 2.0, 0.0
        %v658 = vsel %vm656, 2.0, 0.0
        %v659 = vpack.c.bf16 %v658, %v657
        %v660 = vmul.bf16 %v610, %v659
        %v661 = vld [vmem:[#allocation9] sm:$0xf]
        %v662 = vld [vmem:[#allocation9 + $0x4] sm:$0xf]
        %v663 = vld [vmem:[#allocation9 + $0x8] sm:$0xf]
        %v664 = vld [vmem:[#allocation9 + $0xc] sm:$0xf]
        %v665 = vld [vmem:[#allocation9 + $0x10] sm:$0xf]
        %v666 = vld [vmem:[#allocation9 + $0x14] sm:$0xf]
        %v667 = vld [vmem:[#allocation9 + $0x18] sm:$0xf]
        %v668 = vld [vmem:[#allocation9 + $0x1c] sm:$0xf]
        %v669 = vld [vmem:[#allocation9 + $0x20] sm:$0xf]
        %v670 = vld [vmem:[#allocation9 + $0x24] sm:$0xf]
        %v671 = vld [vmem:[#allocation9 + $0x28] sm:$0xf]
        %v672 = vld [vmem:[#allocation9 + $0x2c] sm:$0xf]
        %v673 = vld [vmem:[#allocation9 + $0x30] sm:$0xf]
        %v674 = vld [vmem:[#allocation9 + $0x34] sm:$0xf]
        %v675 = vld [vmem:[#allocation9 + $0x38] sm:$0xf]
        %v676 = vld [vmem:[#allocation9 + $0x3c] sm:$0xf]
        %v677 = vld [vmem:[#allocation11] sm:$0x1]
        %v679 = vlaneseq
        %v680 = vshrl.u32 %v679, 7
        %v681 = vsub.s32 0, %v680
        %v682 = vrot.slane %v677, %v681
        %v700 = vunpack.c.l.b16 %v661
        %v701 = vunpack.c.l.b16 %v662
        %v702 = vunpack.c.l.b16 %v663
        %v703 = vunpack.c.l.b16 %v664
        %v704 = vunpack.c.l.b16 %v665
        %v705 = vunpack.c.l.b16 %v666
        %v706 = vunpack.c.l.b16 %v667
        %v707 = vunpack.c.l.b16 %v668
        %v708 = vunpack.c.l.b16 %v669
        %v709 = vunpack.c.l.b16 %v670
        %v710 = vunpack.c.l.b16 %v671
        %v711 = vunpack.c.l.b16 %v672
        %v712 = vunpack.c.l.b16 %v673
        %v713 = vunpack.c.l.b16 %v674
        %v714 = vunpack.c.l.b16 %v675
        %v715 = vunpack.c.l.b16 %v676
        %v716 = vpack.c.b16 %v701, %v700
        %v717 = vpack.c.b16 %v703, %v702
        %v718 = vpack.c.b16 %v705, %v704
        %v719 = vpack.c.b16 %v707, %v706
        %v720 = vpack.c.b16 %v709, %v708
        %v721 = vpack.c.b16 %v711, %v710
        %v722 = vpack.c.b16 %v713, %v712
        %v723 = vpack.c.b16 %v715, %v714
        %732 = vmatprep.subr.bf16.mxu0 0
        %733 = vmatpush1.bf16.msra.mxu0 %v716
        %734 = vmatprep.subr.bf16.mxu0 0
        %735 = vmatpush1.bf16.msra.mxu0 %v717
        %736 = vmatprep.subr.bf16.mxu0 0
        %737 = vmatpush1.bf16.msra.mxu0 %v718
        %738 = vmatprep.subr.bf16.mxu0 0
        %739 = vmatpush1.bf16.msra.mxu0 %v719
        %740 = vmatprep.subr.bf16.mxu0 0
        %741 = vmatpush1.bf16.msra.mxu0 %v720
        %742 = vmatprep.subr.bf16.mxu0 0
        %743 = vmatpush1.bf16.msra.mxu0 %v721
        %744 = vmatprep.subr.bf16.mxu0 0
        %745 = vmatpush1.bf16.msra.mxu0 %v722
        %746 = vmatprep.subr.bf16.mxu0 0
        %747 = vmatpush1.bf16.msra.mxu0 %v723
        %748 = vmatprep.subr.bf16.mxu0 0
        %749 = vmatpush1.bf16.msra.mxu0 0
        %750 = vmatprep.subr.bf16.mxu0 0
        %751 = vmatpush1.bf16.msra.mxu0 0
        %752 = vmatprep.subr.bf16.mxu0 0
        %753 = vmatpush1.bf16.msra.mxu0 0
        %754 = vmatprep.subr.bf16.mxu0 0
        %755 = vmatpush1.bf16.msra.mxu0 0
        %756 = vmatprep.subr.bf16.mxu0 0
        %757 = vmatpush1.bf16.msra.mxu0 0
        %758 = vmatprep.subr.bf16.mxu0 0
        %759 = vmatpush1.bf16.msra.mxu0 0
        %760 = vmatprep.subr.bf16.mxu0 0
        %761 = vmatpush1.bf16.msra.mxu0 0
        %762 = vmatprep.subr.bf16.mxu0 0
        %763 = vmatpush1.bf16.msra.mxu0 0
        %764 = vmatprep.mubr.bf16.mxu0 0
        %765 = vmatmul.mubr.bf16.gmra.mrb[0].mxu0 %v610
        %v766 = vpop.f32.mrb[0].mxu0
        %v767 = vadd.f32 %v682, %v766
        %v768 = vpop.f32.mrb[0].mxu0
        %v769 = vpop.f32.mrb[0].mxu0
        %v770 = vadd.f32 %v682, %v769
        %v771 = vpop.f32.mrb[0].mxu0
        %772 = vmatprep.mubr.bf16.mxu0 0
        %773 = vmatmul.mubr.bf16.gmra.mrb[0].mxu0 %v660
        %v774 = vpop.f32.mrb[0].mxu0
        %v775 = vadd.f32 %v682, %v774
        %v776 = vpop.f32.mrb[0].mxu0
        %v777 = vpop.f32.mrb[0].mxu0
        %v778 = vadd.f32 %v682, %v777
        %v779 = vpop.f32.mrb[0].mxu0
        %780 = vdwg.mxu0
        %v781 = vmax.f32 %v767, 0.0
        %v782 = vmax.f32 %v770, 0.0
        %v783 = vmax.f32 %v775, 0.0
        %v784 = vmax.f32 %v778, 0.0
        %vm785 = vcmp.lt.s32.totalorder %v625, 32
        %vm786 = vcmp.lt.s32.totalorder %v626, 32
        %v787 = vsel %vm785, 1, 0
        %v788 = vsel %vm786, 1, 0
        %v789 = vcvt.s32.f32 %v787
        %v790 = vcvt.s32.f32 %v788
        %v791 = vmul.f32 %v781, %v789
        %v792 = vmul.f32 %v782, %v790
        %v793 = vmul.f32 %v783, %v789
        %v794 = vmul.f32 %v784, %v790
        %p795 = scmp.eq.s32.totalorder %s42, 0
        // Predicated region
        $region65: #{tpu_custom_call.1} parent=43 // pred_check
          %p796 = pneg %p795
        $region66: #{tpu_custom_call.1} parent=43 // pred_check_branch
          %798 = sbr.rel (%p796) target = $region68
        $region67: #{tpu_custom_call.1} parent=43 // pred_region
          %799 = vst [vmem:[%s462] sm:$0x1] 0.0
          %800 = vst [vmem:[%s468] sm:$0x1] 0.0
          %801 = vst [vmem:[%s474] sm:$0x1] 0.0
          %802 = vst [vmem:[%s480] sm:$0x1] 0.0
        $region68: #{tpu_custom_call.1} parent=43 // pred_fallthru
          _
        %v803 = vld [vmem:[%s462] sm:$0x1]
        %v804 = vadd.f32 %v791, %v792
        %v805 = vrot.slane %v804, 4
        %v806 = vadd.f32 %v804, %v805
        %v807 = vrot.slane %v806, 2
        %v808 = vadd.f32 %v806, %v807
        %v809 = vrot.slane %v808, 1
        %v810 = vadd.f32 %v808, %v809
        %v811 = vadd.f32 %v803, %v810
        %812 = vst [vmem:[%s462] sm:$0x1] %v811
        %v813 = vld [vmem:[%s468] sm:$0x1]
        %v814 = vmul.f32 %v791, %v791
        %v815 = vmul.f32 %v792, %v792
        %v816 = vadd.f32 %v814, %v815
        %v817 = vrot.slane %v816, 4
        %v818 = vadd.f32 %v816, %v817
        %v819 = vrot.slane %v818, 2
        %v820 = vadd.f32 %v818, %v819
        %v821 = vrot.slane %v820, 1
        %v822 = vadd.f32 %v820, %v821
        %v823 = vadd.f32 %v813, %v822
        %824 = vst [vmem:[%s468] sm:$0x1] %v823
        %v825 = vld [vmem:[%s474] sm:$0x1]
        %v826 = vadd.f32 %v793, %v794
        %v827 = vrot.slane %v826, 4
        %v828 = vadd.f32 %v826, %v827
        %v829 = vrot.slane %v828, 2
        %v830 = vadd.f32 %v828, %v829
        %v831 = vrot.slane %v830, 1
        %v832 = vadd.f32 %v830, %v831
        %v833 = vadd.f32 %v825, %v832
        %834 = vst [vmem:[%s474] sm:$0x1] %v833
        %v835 = vld [vmem:[%s480] sm:$0x1]
        %v836 = vmul.f32 %v793, %v793
        %v837 = vmul.f32 %v794, %v794
        %v838 = vadd.f32 %v836, %v837
        %v839 = vrot.slane %v838, 4
        %v840 = vadd.f32 %v838, %v839
        %v841 = vrot.slane %v840, 2
        %v842 = vadd.f32 %v840, %v841
        %v843 = vrot.slane %v842, 1
        %v844 = vadd.f32 %v842, %v843
        %v845 = vadd.f32 %v835, %v844
        %846 = vst [vmem:[%s480] sm:$0x1] %v845
        %s847 = sand.u32 %s192, 1
        %s848 = scalar_lea.sflag [#allocation5], %s847
        %s849 = sand.u32 %s192, 1
        %s850 = smul.addr %s849, 8
        %s851 = scalar_lea.vmem [#allocation12], %s850
        %s852 = sand.u32 %s37, 1
        %s853 = scalar_lea.sflag [#allocation14], %s852
        %s854 = sand.u32 %s218, 1
        %s855 = scalar_lea.vmem [#allocation13], %s854
        %s856 = sand.u32 %s37, 1
        %s857 = scalar_lea.sflag [#allocation14], %s856
        %s858 = sand.u32 %s244, 1
        %s859 = scalar_lea.vmem [#allocation15], %s858
        %s860 = sand.u32 %s37, 1
        %s861 = scalar_lea.sflag [#allocation17], %s860
        %s862 = sand.u32 %s270, 1
        %s863 = scalar_lea.vmem [#allocation16], %s862
        %s864 = sand.u32 %s37, 1
        %s865 = scalar_lea.sflag [#allocation17], %s864
        %s866 = sand.u32 %s296, 1
        %s867 = scalar_lea.vmem [#allocation18], %s866
        // Predicated region
        $region69: #{tpu_custom_call.1} parent=43 // pred_check
          %p868 = pneg %p202
        $region70: #{tpu_custom_call.1} parent=43 // pred_check_branch
          %870 = sbr.rel (%p868) target = $region72
        $region71: #{tpu_custom_call.1} parent=43 // pred_region
          %s871 = sadd.s32 %s41, %s42
          %s872 = smul.u32 2, %s871
          %s874 = ssub.s32 128, 128
          %875 = vsyncadd %s848, %s874
          %s876 = smul.addr %s872, 64
          %s877 = scalar_lea.hbm %s6, %s876
          %s878 = sshll.u32 %s851, 4
          %s879 = int_to_ptr.vmem [resolvable:$true] %s878
          %884 = dma.vmem_to_hbm [thread:$0]  %s879, 128, %s877, %s848, 64, 64, 4
        $region72: #{tpu_custom_call.1} parent=43 // pred_fallthru
          _
        // Predicated region
        $region73: #{tpu_custom_call.1} parent=43 // pred_check
          %p885 = pneg %p228
        $region74: #{tpu_custom_call.1} parent=43 // pred_check_branch
          %887 = sbr.rel (%p885) target = $region76
        $region75: #{tpu_custom_call.1} parent=43 // pred_region
          %s889 = ssub.s32 16, 16
          %890 = vsyncadd %s853, %s889
          %s891 = smul.addr %s41, 16
          %s892 = scalar_lea.hbm %s7, %s891
          %s894 = sshll.u32 %s855, 4
          %s895 = int_to_ptr.vmem [resolvable:$true] %s894
          %897 = dma.vmem_to_hbm [thread:$0]  %s895, 16, %s892, %s853
        $region76: #{tpu_custom_call.1} parent=43 // pred_fallthru
          _
        // Predicated region
        $region77: #{tpu_custom_call.1} parent=43 // pred_check
          %p898 = pneg %p254
        $region78: #{tpu_custom_call.1} parent=43 // pred_check_branch
          %900 = sbr.rel (%p898) target = $region80
        $region79: #{tpu_custom_call.1} parent=43 // pred_region
          %s902 = ssub.s32 16, 16
          %903 = vsyncadd %s857, %s902
          %s904 = smul.addr %s41, 16
          %s905 = scalar_lea.hbm %s8, %s904
          %s907 = sshll.u32 %s859, 4
          %s908 = int_to_ptr.vmem [resolvable:$true] %s907
          %910 = dma.vmem_to_hbm [thread:$0]  %s908, 16, %s905, %s857
        $region80: #{tpu_custom_call.1} parent=43 // pred_fallthru
          _
        // Predicated region
        $region81: #{tpu_custom_call.1} parent=43 // pred_check
          %p911 = pneg %p280
        $region82: #{tpu_custom_call.1} parent=43 // pred_check_branch
          %913 = sbr.rel (%p911) target = $region84
        $region83: #{tpu_custom_call.1} parent=43 // pred_region
          %s915 = ssub.s32 16, 16
          %916 = vsyncadd %s861, %s915
          %s917 = smul.addr %s41, 16
          %s918 = scalar_lea.hbm %s9, %s917
          %s920 = sshll.u32 %s863, 4
          %s921 = int_to_ptr.vmem [resolvable:$true] %s920
          %923 = dma.vmem_to_hbm [thread:$0]  %s921, 16, %s918, %s861
        $region84: #{tpu_custom_call.1} parent=43 // pred_fallthru
          _
        // Predicated region
        $region85: #{tpu_custom_call.1} parent=43 // pred_check
          %p924 = pneg %p306
        $region86: #{tpu_custom_call.1} parent=43 // pred_check_branch
          %926 = sbr.rel (%p924) target = $region88
        $region87: #{tpu_custom_call.1} parent=43 // pred_region
          %s928 = ssub.s32 16, 16
          %929 = vsyncadd %s865, %s928
          %s930 = smul.addr %s41, 16
          %s931 = scalar_lea.hbm %s10, %s930
          %s933 = sshll.u32 %s867, 4
          %s934 = int_to_ptr.vmem [resolvable:$true] %s933
          %936 = dma.vmem_to_hbm [thread:$0]  %s934, 16, %s931, %s865
        $region88: #{tpu_custom_call.1} parent=43 // pred_fallthru
          _
      $region44: #{tpu_custom_call.1} parent=5 // pred_fallthru
        _
      %p937 = scmp.le.s32.totalorder 2, %s32
      // Predicated region
      $region89: #{tpu_custom_call.1} parent=5 // pred_check
        %p938 = pneg %p937
      $region90: #{tpu_custom_call.1} parent=5 // pred_check_branch
        %940 = sbr.rel (%p938) target = $region92
      $region91: #{tpu_custom_call.1} parent=5 // pred_region
        %s941 = ssub.s32 %s32, 2
        // Predicated region
        $region93: #{tpu_custom_call.1} parent=91 // pred_check
          %p942 = pneg %p208
        $region94: #{tpu_custom_call.1} parent=91 // pred_check_branch
          %944 = sbr.rel (%p942) target = $region96
        $region95: #{tpu_custom_call.1} parent=91 // pred_region
          %s945 = sand.u32 %s193, 1
          %s946 = scalar_lea.sflag [#allocation5], %s945
          %s947 = sand.u32 %s193, 1
          %s948 = smul.addr %s947, 8
          %s949 = scalar_lea.vmem [#allocation12], %s948
          %950 = dma.done %s946, 128
        $region96: #{tpu_custom_call.1} parent=91 // pred_fallthru
          _
        // Predicated region
        $region97: #{tpu_custom_call.1} parent=91 // pred_check
          %p951 = pneg %p234
        $region98: #{tpu_custom_call.1} parent=91 // pred_check_branch
          %953 = sbr.rel (%p951) target = $region100
        $region99: #{tpu_custom_call.1} parent=91 // pred_region
          %s954 = sand.u32 %s38, 1
          %s955 = scalar_lea.sflag [#allocation14], %s954
          %s956 = sand.u32 %s219, 1
          %s957 = scalar_lea.vmem [#allocation13], %s956
          %958 = dma.done %s955, 16
        $region100: #{tpu_custom_call.1} parent=91 // pred_fallthru
          _
        // Predicated region
        $region101: #{tpu_custom_call.1} parent=91 // pred_check
          %p959 = pneg %p260
        $region102: #{tpu_custom_call.1} parent=91 // pred_check_branch
          %961 = sbr.rel (%p959) target = $region104
        $region103: #{tpu_custom_call.1} parent=91 // pred_region
          %s962 = sand.u32 %s38, 1
          %s963 = scalar_lea.sflag [#allocation14], %s962
          %s964 = sand.u32 %s245, 1
          %s965 = scalar_lea.vmem [#allocation15], %s964
          %966 = dma.done %s963, 16
        $region104: #{tpu_custom_call.1} parent=91 // pred_fallthru
          _
        // Predicated region
        $region105: #{tpu_custom_call.1} parent=91 // pred_check
          %p967 = pneg %p286
        $region106: #{tpu_custom_call.1} parent=91 // pred_check_branch
          %969 = sbr.rel (%p967) target = $region108
        $region107: #{tpu_custom_call.1} parent=91 // pred_region
          %s970 = sand.u32 %s38, 1
          %s971 = scalar_lea.sflag [#allocation17], %s970
          %s972 = sand.u32 %s271, 1
          %s973 = scalar_lea.vmem [#allocation16], %s972
          %974 = dma.done %s971, 16
        $region108: #{tpu_custom_call.1} parent=91 // pred_fallthru
          _
        // Predicated region
        $region109: #{tpu_custom_call.1} parent=91 // pred_check
          %p975 = pneg %p312
        $region110: #{tpu_custom_call.1} parent=91 // pred_check_branch
          %977 = sbr.rel (%p975) target = $region112
        $region111: #{tpu_custom_call.1} parent=91 // pred_region
          %s978 = sand.u32 %s38, 1
          %s979 = scalar_lea.sflag [#allocation17], %s978
          %s980 = sand.u32 %s297, 1
          %s981 = scalar_lea.vmem [#allocation18], %s980
          %982 = dma.done %s979, 16
        $region112: #{tpu_custom_call.1} parent=91 // pred_fallthru
          _
      $region92: #{tpu_custom_call.1} parent=5 // pred_fallthru
        _
    $region6: #{tpu_custom_call.1} parent=1 // loop_footer
      %s36 = sadd.s32 1, %s32
    $region7: #{tpu_custom_call.1} parent=1 // loop_footer_branch
      %31 = sbr.rel target = $region3
    $region8: #{tpu_custom_call.1} parent=1 // loop_exit
      _
    %983 = vsyncpa [#allocation4], 1
    %s984 = scalar_lea.sflag [#allocation4], 1
    %985 = vsyncpa %s984, 1
    %986 = vsyncpa [#allocation7], 1
    %987 = vsyncpa [#allocation10], 1
    %988 = vsyncpa [#allocation5], 1
    %s989 = scalar_lea.sflag [#allocation5], 1
    %990 = vsyncpa %s989, 1
    %991 = vsyncpa [#allocation14], 1
    %s992 = scalar_lea.sflag [#allocation14], 1
    %993 = vsyncpa %s992, 1
    %994 = vsyncpa [#allocation17], 1
    %s995 = scalar_lea.sflag [#allocation17], 1
    %996 = vsyncpa %s995, 1

</llo_original>
